<compile_context>
chip_gen: v5e
topology: v5e:2x2
jax: 0.10.0
libtpu: 0.0.40
codegen_flags: <defaults>
</compile_context>

<pallas_src>
import jax
import jax.numpy as jnp
import numpy as np
from jax import lax
from jax.experimental import pallas as pl
from jax.experimental.pallas import tpu as pltpu

MAX_LENGTH = 34   # module default max_length
HIDDEN = 32       # hidden_size
OUTPUT = 16       # output_size (vocab)


def attn_decoder_kernel(
    tok_ref,           # SMEM (T,) int32 — scalar-prefetched token ids
    emb_tbl_ref,       # (V, H)      embedding table
    hid0_ref,          # (1, H)      initial hidden state
    enc_ref,           # (L, H)      encoder outputs
    w_emb_ref,         # (H, L+H)    [w_attn_emb | w_comb_emb]
    w_hid_ref,         # (H, L+3H)   [w_attn_hid | w_hh (gates r,z,n)]
    w_comb_a_ref,      # (H, H)      attn_combine, attn_applied half
    w_ih_ref,          # (H, 3H)     GRU input weights (gates r,z,n)
    w_out_ref,         # (H, V)      output projection
    bias_ref,          # (4, L+3H)   packed biases (see pack_params)
    logp_ref,          # out (T, V)  log-probs per step
    hid_out_ref,       # out (1, H)  final hidden state
    attn_ref,          # out (T, L)  attention weights per step
):
    f32 = jnp.float32
    H, L, V = HIDDEN, MAX_LENGTH, OUTPUT
    T = logp_ref.shape[0]

    # --- hoist all weights / biases out of the decode loop (loop-invariant) ---
    w_emb = w_emb_ref[...]
    w_hid = w_hid_ref[...]
    w_comb_a = w_comb_a_ref[...]
    w_ih = w_ih_ref[...]
    w_out = w_out_ref[...]
    enc = enc_ref[...]
    bias = bias_ref[...]
    b_emb = bias[0:1, :L + H]
    b_hid = bias[1:2, :]
    b_ih = bias[2:3, :3 * H]
    b_out = bias[3:4, :V]

    def step(t, hid):
        tok = tok_ref[t]
        emb = emb_tbl_ref[pl.ds(tok, 1), :]       # (1, H) embedding lookup (dropout = identity)

        # Fused emb-side and hid-side projections.
        #   es = [attn_logits_emb | combine_emb]      (1, L+H)
        #   hs = [attn_logits_hid | gh_r|gh_z|gh_n]   (1, L+3H)   (b_hh folded in)
        es = jnp.dot(emb, w_emb, preferred_element_type=f32) + b_emb
        hs = jnp.dot(hid, w_hid, preferred_element_type=f32) + b_hid

        # attention softmax over L (stable), divide on the EUP
        attn_logits = es[:, :L] + hs[:, :L]
        m = jnp.max(attn_logits, axis=-1, keepdims=True)
        e = jnp.exp(attn_logits - m)
        attn_w = e * pl.reciprocal(jnp.sum(e, axis=-1, keepdims=True), approx=True)
        attn_ref[pl.ds(t, 1), :] = attn_w

        # attn_applied = attn_weights @ encoder_outputs
        attn_applied = jnp.dot(attn_w, enc, preferred_element_type=f32)   # (1, H)

        # attn_combine(cat(embedded, attn_applied)) + ReLU   (b_comb already in es)
        x = es[:, L:] + jnp.dot(attn_applied, w_comb_a, preferred_element_type=f32)
        x = jnp.maximum(x, 0.0)

        # single-step GRU, PyTorch gate order (r, z, n); gates fused into 2 dots
        gi = jnp.dot(x, w_ih, preferred_element_type=f32) + b_ih
        gh = hs[:, L:]
        r = jax.nn.sigmoid(gi[:, :H] + gh[:, :H])
        z = jax.nn.sigmoid(gi[:, H:2 * H] + gh[:, H:2 * H])
        n = jnp.tanh(gi[:, 2 * H:] + r * gh[:, 2 * H:])
        h_new = (1.0 - z) * n + z * hid

        # out = Linear(H -> V), then log_softmax over V
        logits = jnp.dot(h_new, w_out, preferred_element_type=f32) + b_out
        lm = jnp.max(logits, axis=-1, keepdims=True)
        lse = jnp.log(jnp.sum(jnp.exp(logits - lm), axis=-1, keepdims=True)) + lm
        logp_ref[pl.ds(t, 1), :] = logits - lse
        return h_new

    # whole decode loop in-kernel; T is static -> fully unrolled for the scheduler
    h_final = lax.fori_loop(0, T, step, hid0_ref[...], unroll=True)
    hid_out_ref[...] = h_final


def pack_params(params):
    """Consolidate the PyTorch-style parameter dict into a few VMEM slabs."""
    H, L, V = HIDDEN, MAX_LENGTH, OUTPUT
    w_attn = params["w_attn"]   # (2H, L)
    w_comb = params["w_comb"]   # (2H, H)
    w_emb_side = jnp.concatenate([w_attn[:H], w_comb[:H]], axis=1)        # (H, L+H)
    w_hid_side = jnp.concatenate([w_attn[H:], params["w_hh"]], axis=1)    # (H, L+3H)
    w_comb_a = w_comb[H:]                                                 # (H, H)

    bias = jnp.zeros((4, L + 3 * H), jnp.float32)
    bias = bias.at[0, :L].set(params["b_attn"])            # row 0: [b_attn | b_comb]
    bias = bias.at[0, L:L + H].set(params["b_comb"])
    bias = bias.at[1, L:].set(params["b_hh"])              # row 1: [0 | b_hh]
    bias = bias.at[2, :3 * H].set(params["b_ih"])          # row 2: [b_ih | 0]
    bias = bias.at[3, :V].set(params["b_out"])             # row 3: [b_out | 0]

    return (params["embedding"].astype(jnp.float32),
            w_emb_side.astype(jnp.float32),
            w_hid_side.astype(jnp.float32),
            w_comb_a.astype(jnp.float32),
            params["w_ih"].astype(jnp.float32),
            params["w_out"].astype(jnp.float32),
            bias)


def attn_decoder_decode(params, tokens, hidden, encoder_outputs):
    """Run T teacher-forced decode steps fully inside one pallas_call invocation."""
    H, L, V = HIDDEN, MAX_LENGTH, OUTPUT
    T = int(tokens.shape[0])
    emb_tbl, w_emb_s, w_hid_s, w_comb_a, w_ih, w_out, bias = pack_params(params)
    hid0 = hidden.reshape(1, H).astype(jnp.float32)
    enc = encoder_outputs.astype(jnp.float32)

    const = lambda i, tok: (0, 0)   # everything is a single resident block
    grid_spec = pltpu.PrefetchScalarGridSpec(
        num_scalar_prefetch=1,
        grid=(1,),                  # single invocation; decode loop runs in-kernel
        in_specs=[
            pl.BlockSpec((V, H), const),            # embedding table
            pl.BlockSpec((1, H), const),            # initial hidden
            pl.BlockSpec((L, H), const),            # encoder outputs
            pl.BlockSpec((H, L + H), const),        # w_emb_side
            pl.BlockSpec((H, L + 3 * H), const),    # w_hid_side
            pl.BlockSpec((H, H), const),            # w_comb_a
            pl.BlockSpec((H, 3 * H), const),        # w_ih
            pl.BlockSpec((H, V), const),            # w_out
            pl.BlockSpec((4, L + 3 * H), const),    # packed biases
        ],
        out_specs=(
            pl.BlockSpec((T, V), const),            # log-probs, resident, 1 HBM writeback
            pl.BlockSpec((1, H), const),            # final hidden
            pl.BlockSpec((T, L), const),            # attention weights
        ),
    )

    logp, hid_final, attn_w = pl.pallas_call(
        attn_decoder_kernel,
        grid_spec=grid_spec,
        out_shape=(
            jax.ShapeDtypeStruct((T, V), jnp.float32),
            jax.ShapeDtypeStruct((1, H), jnp.float32),
            jax.ShapeDtypeStruct((T, L), jnp.float32),
        ),
        compiler_params=pltpu.CompilerParams(
            dimension_semantics=("arbitrary",)),
    )(tokens.astype(jnp.int32), emb_tbl, hid0, enc,
      w_emb_s, w_hid_s, w_comb_a, w_ih, w_out, bias)

    return logp, hid_final, attn_w


def attn_decoder_forward(params, token, hidden, encoder_outputs):
    """Single decode step — exactly the PyTorch module forward (eval mode)."""
    tokens = jnp.reshape(token, (1,)).astype(jnp.int32)
    logp, hid, attn_w = attn_decoder_decode(params, tokens, hidden, encoder_outputs)
    # match PyTorch return shapes: output (1, V), hidden (1, 1, H), attn (1, L)
    return logp, hid.reshape(1, 1, HIDDEN), attn_w


def reference_forward(params, token, hidden, encoder_outputs):
    """Pure-JAX reference mirroring the PyTorch forward (eval mode)."""
    H = HIDDEN
    embedded = params["embedding"][token][None, :]
    hid = hidden.reshape(1, H)
    attn_logits = jnp.concatenate([embedded, hid], axis=1) @ params["w_attn"] + params["b_attn"]
    attn_w = jax.nn.softmax(attn_logits, axis=1)
    attn_applied = attn_w @ encoder_outputs
    x = jnp.concatenate([embedded, attn_applied], axis=1) @ params["w_comb"] + params["b_comb"]
    x = jax.nn.relu(x)
    gi = x @ params["w_ih"] + params["b_ih"]
    gh = hid @ params["w_hh"] + params["b_hh"]
    r = jax.nn.sigmoid(gi[:, :H] + gh[:, :H])
    z = jax.nn.sigmoid(gi[:, H:2 * H] + gh[:, H:2 * H])
    n = jnp.tanh(gi[:, 2 * H:] + r * gh[:, 2 * H:])
    h_new = (1.0 - z) * n + z * hid
    logits = h_new @ params["w_out"] + params["b_out"]
    logp = jax.nn.log_softmax(logits, axis=1)
    return logp, h_new.reshape(1, 1, H), attn_w


def reference_decode(params, tokens, hidden, encoder_outputs):
    logps, attns = [], []
    hid = hidden
    for i in range(tokens.shape[0]):
        logp, hid, attn = reference_forward(params, tokens[i], hid, encoder_outputs)
        logps.append(logp)
        attns.append(attn)
    return jnp.concatenate(logps, 0), hid.reshape(1, HIDDEN), jnp.concatenate(attns, 0)


def init_params(key):
    ks = jax.random.split(key, 11)
    s = 0.1
    f32 = jnp.float32
    return {
        "embedding": jax.random.normal(ks[0], (OUTPUT, HIDDEN), f32) * s,
        "w_attn": jax.random.normal(ks[1], (2 * HIDDEN, MAX_LENGTH), f32) * s,
        "b_attn": jax.random.normal(ks[2], (MAX_LENGTH,), f32) * s,
        "w_comb": jax.random.normal(ks[3], (2 * HIDDEN, HIDDEN), f32) * s,
        "b_comb": jax.random.normal(ks[4], (HIDDEN,), f32) * s,
        "w_ih": jax.random.normal(ks[5], (HIDDEN, 3 * HIDDEN), f32) * s,
        "w_hh": jax.random.normal(ks[6], (HIDDEN, 3 * HIDDEN), f32) * s,
        "b_ih": jax.random.normal(ks[7], (3 * HIDDEN,), f32) * s,
        "b_hh": jax.random.normal(ks[8], (3 * HIDDEN,), f32) * s,
        "w_out": jax.random.normal(ks[9], (HIDDEN, OUTPUT), f32) * s,
        "b_out": jax.random.normal(ks[10], (OUTPUT,), f32) * s,
    }


if __name__ == "__main__":
    key = jax.random.PRNGKey(0)
    kp, kh, ke, kt = jax.random.split(key, 4)
    params = init_params(kp)

    hidden = jax.random.normal(kh, (1, 1, HIDDEN), jnp.float32)            # GRU hidden
    encoder_outputs = jax.random.normal(ke, (MAX_LENGTH, HIDDEN), jnp.float32)

    # --- single decode step: exact module-forward semantics ---
    token = jnp.array(3, dtype=jnp.int32)
    out = attn_decoder_forward(params, token, hidden, encoder_outputs)
    logp, h_new, attn_w = jax.block_until_ready(out)
    ref_logp, ref_h, ref_attn = reference_forward(params, token, hidden, encoder_outputs)
    assert np.allclose(np.asarray(logp), np.asarray(ref_logp), atol=1e-3, rtol=1e-3)
    assert np.allclose(np.asarray(h_new), np.asarray(ref_h), atol=1e-3, rtol=1e-3)
    assert np.allclose(np.asarray(attn_w), np.asarray(ref_attn), atol=1e-3, rtol=1e-3)

    # --- multi-step teacher-forced decode: whole loop inside one kernel ---
    T = 8
    tokens = jax.random.randint(kt, (T,), 0, OUTPUT, dtype=jnp.int32)
    out_seq = attn_decoder_decode(params, tokens, hidden, encoder_outputs)
    logp_seq, hid_seq, attn_seq = jax.block_until_ready(out_seq)
    ref_logp_seq, ref_hid_seq, ref_attn_seq = reference_decode(params, tokens, hidden, encoder_outputs)
    assert np.allclose(np.asarray(logp_seq), np.asarray(ref_logp_seq), atol=1e-3, rtol=1e-3)
    assert np.allclose(np.asarray(hid_seq), np.asarray(ref_hid_seq), atol=1e-3, rtol=1e-3)
    assert np.allclose(np.asarray(attn_seq), np.asarray(ref_attn_seq), atol=1e-3, rtol=1e-3)

    print("KERNEL_OK")
</pallas_src>

<mosaic_0001>
module attributes {stable_mosaic.version = 11 : i64} {
  func.func @attn_decoder_kernel(%arg0: i32, %arg1: memref<1xi32, #tpu.memory_space<smem>>, %arg2: memref<16x32xf32, #tpu.memory_space<vmem>>, %arg3: memref<1x32xf32, #tpu.memory_space<vmem>>, %arg4: memref<34x32xf32, #tpu.memory_space<vmem>>, %arg5: memref<32x66xf32, #tpu.memory_space<vmem>>, %arg6: memref<32x130xf32, #tpu.memory_space<vmem>>, %arg7: memref<32x32xf32, #tpu.memory_space<vmem>>, %arg8: memref<32x96xf32, #tpu.memory_space<vmem>>, %arg9: memref<32x16xf32, #tpu.memory_space<vmem>>, %arg10: memref<4x130xf32, #tpu.memory_space<vmem>>, %arg11: memref<1x16xf32, #tpu.memory_space<vmem>>, %arg12: memref<1x32xf32, #tpu.memory_space<vmem>>, %arg13: memref<1x34xf32, #tpu.memory_space<vmem>>) attributes {dimension_semantics = [#tpu.dimension_semantics<arbitrary>], iteration_bounds = array<i64: 1>, scalar_prefetch = 1 : i64, scratch_operands = 0 : i64, tpu.core_type = #tpu.core_type<tc>, window_params = [{pipeline_mode = #tpu.pipeline_mode<synchronous>, transform_indices = @transform_0, window_bounds = array<i64: 16, 32>}, {pipeline_mode = #tpu.pipeline_mode<synchronous>, transform_indices = @transform_1, window_bounds = array<i64: 1, 32>}, {pipeline_mode = #tpu.pipeline_mode<synchronous>, transform_indices = @transform_2, window_bounds = array<i64: 34, 32>}, {pipeline_mode = #tpu.pipeline_mode<synchronous>, transform_indices = @transform_3, window_bounds = array<i64: 32, 66>}, {pipeline_mode = #tpu.pipeline_mode<synchronous>, transform_indices = @transform_4, window_bounds = array<i64: 32, 130>}, {pipeline_mode = #tpu.pipeline_mode<synchronous>, transform_indices = @transform_5, window_bounds = array<i64: 32, 32>}, {pipeline_mode = #tpu.pipeline_mode<synchronous>, transform_indices = @transform_6, window_bounds = array<i64: 32, 96>}, {pipeline_mode = #tpu.pipeline_mode<synchronous>, transform_indices = @transform_7, window_bounds = array<i64: 32, 16>}, {pipeline_mode = #tpu.pipeline_mode<synchronous>, transform_indices = @transform_8, window_bounds = array<i64: 4, 130>}, {pipeline_mode = #tpu.pipeline_mode<synchronous>, transform_indices = @transform_9, window_bounds = array<i64: 1, 16>}, {pipeline_mode = #tpu.pipeline_mode<synchronous>, transform_indices = @transform_10, window_bounds = array<i64: 1, 32>}, {pipeline_mode = #tpu.pipeline_mode<synchronous>, transform_indices = @transform_11, window_bounds = array<i64: 1, 34>}]} {
    %c0 = arith.constant 0 : index
    %c0_0 = arith.constant 0 : index
    %0 = vector.load %arg5[%c0, %c0_0] : memref<32x66xf32, #tpu.memory_space<vmem>>, vector<32x66xf32>
    %c0_1 = arith.constant 0 : index
    %c0_2 = arith.constant 0 : index
    %1 = vector.load %arg6[%c0_1, %c0_2] : memref<32x130xf32, #tpu.memory_space<vmem>>, vector<32x130xf32>
    %c0_3 = arith.constant 0 : index
    %c0_4 = arith.constant 0 : index
    %2 = vector.load %arg7[%c0_3, %c0_4] : memref<32x32xf32, #tpu.memory_space<vmem>>, vector<32x32xf32>
    %c0_5 = arith.constant 0 : index
    %c0_6 = arith.constant 0 : index
    %3 = vector.load %arg8[%c0_5, %c0_6] : memref<32x96xf32, #tpu.memory_space<vmem>>, vector<32x96xf32>
    %c0_7 = arith.constant 0 : index
    %c0_8 = arith.constant 0 : index
    %4 = vector.load %arg9[%c0_7, %c0_8] : memref<32x16xf32, #tpu.memory_space<vmem>>, vector<32x16xf32>
    %c0_9 = arith.constant 0 : index
    %c0_10 = arith.constant 0 : index
    %5 = vector.load %arg4[%c0_9, %c0_10] : memref<34x32xf32, #tpu.memory_space<vmem>>, vector<34x32xf32>
    %c0_11 = arith.constant 0 : index
    %c0_12 = arith.constant 0 : index
    %6 = vector.load %arg10[%c0_11, %c0_12] : memref<4x130xf32, #tpu.memory_space<vmem>>, vector<4x130xf32>
    %7 = vector.extract_strided_slice %6 {offsets = [0, 0], sizes = [1, 66], strides = [1, 1]} : vector<4x130xf32> to vector<1x66xf32>
    %8 = vector.extract_strided_slice %6 {offsets = [1, 0], sizes = [1, 130], strides = [1, 1]} : vector<4x130xf32> to vector<1x130xf32>
    %9 = vector.extract_strided_slice %6 {offsets = [2, 0], sizes = [1, 96], strides = [1, 1]} : vector<4x130xf32> to vector<1x96xf32>
    %10 = vector.extract_strided_slice %6 {offsets = [3, 0], sizes = [1, 16], strides = [1, 1]} : vector<4x130xf32> to vector<1x16xf32>
    %c0_13 = arith.constant 0 : index
    %c0_14 = arith.constant 0 : index
    %11 = vector.load %arg3[%c0_13, %c0_14] : memref<1x32xf32, #tpu.memory_space<vmem>>, vector<1x32xf32>
    %c0_i32 = arith.constant 0 : i32
    %12 = arith.index_cast %c0_i32 : i32 to index
    %13 = memref.load %arg1[%12] : memref<1xi32, #tpu.memory_space<smem>>
    %14 = arith.index_cast %13 : i32 to index
    %c0_15 = arith.constant 0 : index
    %15 = vector.load %arg2[%14, %c0_15] : memref<16x32xf32, #tpu.memory_space<vmem>>, vector<1x32xf32>
    %cst = arith.constant dense<0.000000e+00> : vector<1x66xf32>
    %16 = tpu.matmul %15, %0, %cst {dimension_numbers = #tpu.dot_dimension_numbers<[1], [0], [0], [1], [0, 0, 1, 1], [], []>} : vector<1x32xf32>, vector<32x66xf32>, vector<1x66xf32> -> vector<1x66xf32>
    %17 = arith.addf %16, %7 : vector<1x66xf32>
    %cst_16 = arith.constant dense<0.000000e+00> : vector<1x130xf32>
    %18 = tpu.matmul %11, %1, %cst_16 {dimension_numbers = #tpu.dot_dimension_numbers<[1], [0], [0], [1], [0, 0, 1, 1], [], []>} : vector<1x32xf32>, vector<32x130xf32>, vector<1x130xf32> -> vector<1x130xf32>
    %19 = arith.addf %18, %8 : vector<1x130xf32>
    %20 = vector.extract_strided_slice %17 {offsets = [0, 0], sizes = [1, 34], strides = [1, 1]} : vector<1x66xf32> to vector<1x34xf32>
    %21 = vector.extract_strided_slice %19 {offsets = [0, 0], sizes = [1, 34], strides = [1, 1]} : vector<1x130xf32> to vector<1x34xf32>
    %22 = arith.addf %20, %21 : vector<1x34xf32>
    %cst_17 = arith.constant dense<0xFF800000> : vector<1xf32>
    %23 = vector.multi_reduction <maximumf>, %22, %cst_17 [1] : vector<1x34xf32> to vector<1xf32>
    %24 = vector.shape_cast %23 : vector<1xf32> to vector<1x1xf32>
    %25 = vector.broadcast %24 : vector<1x1xf32> to vector<1x34xf32>
    %26 = arith.subf %22, %25 : vector<1x34xf32>
    %27 = math.exp %26 : vector<1x34xf32>
    %cst_18 = arith.constant dense<0.000000e+00> : vector<1xf32>
    %28 = vector.multi_reduction <add>, %27, %cst_18 [1] : vector<1x34xf32> to vector<1xf32>
    %29 = vector.shape_cast %28 : vector<1xf32> to vector<1x1xf32>
    %30 = tpu.reciprocal %29 {approx = true} : vector<1x1xf32> -> vector<1x1xf32>
    %31 = vector.broadcast %30 : vector<1x1xf32> to vector<1x34xf32>
    %32 = arith.mulf %27, %31 : vector<1x34xf32>
    %33 = arith.index_cast %c0_i32 : i32 to index
    %c0_19 = arith.constant 0 : index
    %34 = vector.load %arg13[%33, %c0_19] : memref<1x34xf32, #tpu.memory_space<vmem>>, vector<1x34xf32>
    tpu.vector_store %arg13[%33, %c0_19], %32 {strides = array<i32>} : memref<1x34xf32, #tpu.memory_space<vmem>>, vector<1x34xf32>,
    %cst_20 = arith.constant dense<0.000000e+00> : vector<1x32xf32>
    %35 = tpu.matmul %32, %5, %cst_20 {dimension_numbers = #tpu.dot_dimension_numbers<[1], [0], [0], [1], [0, 0, 1, 1], [], []>} : vector<1x34xf32>, vector<34x32xf32>, vector<1x32xf32> -> vector<1x32xf32>
    %36 = vector.extract_strided_slice %17 {offsets = [0, 34], sizes = [1, 32], strides = [1, 1]} : vector<1x66xf32> to vector<1x32xf32>
    %cst_21 = arith.constant dense<0.000000e+00> : vector<1x32xf32>
    %37 = tpu.matmul %35, %2, %cst_21 {dimension_numbers = #tpu.dot_dimension_numbers<[1], [0], [0], [1], [0, 0, 1, 1], [], []>} : vector<1x32xf32>, vector<32x32xf32>, vector<1x32xf32> -> vector<1x32xf32>
    %38 = arith.addf %36, %37 : vector<1x32xf32>
    %cst_22 = arith.constant 0.000000e+00 : f32
    %39 = vector.broadcast %cst_22 : f32 to vector<1x32xf32>
    %40 = arith.maximumf %38, %39 : vector<1x32xf32>
    %cst_23 = arith.constant dense<0.000000e+00> : vector<1x96xf32>
    %41 = tpu.matmul %40, %3, %cst_23 {dimension_numbers = #tpu.dot_dimension_numbers<[1], [0], [0], [1], [0, 0, 1, 1], [], []>} : vector<1x32xf32>, vector<32x96xf32>, vector<1x96xf32> -> vector<1x96xf32>
    %42 = arith.addf %41, %9 : vector<1x96xf32>
    %43 = vector.extract_strided_slice %19 {offsets = [0, 34], sizes = [1, 96], strides = [1, 1]} : vector<1x130xf32> to vector<1x96xf32>
    %44 = vector.extract_strided_slice %42 {offsets = [0, 0], sizes = [1, 32], strides = [1, 1]} : vector<1x96xf32> to vector<1x32xf32>
    %45 = vector.extract_strided_slice %43 {offsets = [0, 0], sizes = [1, 32], strides = [1, 1]} : vector<1x96xf32> to vector<1x32xf32>
    %46 = arith.addf %44, %45 : vector<1x32xf32>
    %47 = arith.negf %46 : vector<1x32xf32>
    %48 = math.exp %47 : vector<1x32xf32>
    %cst_24 = arith.constant 1.000000e+00 : f32
    %49 = vector.broadcast %cst_24 : f32 to vector<1x32xf32>
    %50 = arith.addf %49, %48 : vector<1x32xf32>
    %51 = arith.divf %49, %50 : vector<1x32xf32>
    %52 = vector.extract_strided_slice %42 {offsets = [0, 32], sizes = [1, 32], strides = [1, 1]} : vector<1x96xf32> to vector<1x32xf32>
    %53 = vector.extract_strided_slice %43 {offsets = [0, 32], sizes = [1, 32], strides = [1, 1]} : vector<1x96xf32> to vector<1x32xf32>
    %54 = arith.addf %52, %53 : vector<1x32xf32>
    %55 = arith.negf %54 : vector<1x32xf32>
    %56 = math.exp %55 : vector<1x32xf32>
    %cst_25 = arith.constant 1.000000e+00 : f32
    %57 = vector.broadcast %cst_25 : f32 to vector<1x32xf32>
    %58 = arith.addf %57, %56 : vector<1x32xf32>
    %59 = arith.divf %57, %58 : vector<1x32xf32>
    %60 = vector.extract_strided_slice %42 {offsets = [0, 64], sizes = [1, 32], strides = [1, 1]} : vector<1x96xf32> to vector<1x32xf32>
    %61 = vector.extract_strided_slice %43 {offsets = [0, 64], sizes = [1, 32], strides = [1, 1]} : vector<1x96xf32> to vector<1x32xf32>
    %62 = arith.mulf %51, %61 : vector<1x32xf32>
    %63 = arith.addf %60, %62 : vector<1x32xf32>
    %64 = math.tanh %63 : vector<1x32xf32>
    %cst_26 = arith.constant 1.000000e+00 : f32
    %65 = vector.broadcast %cst_26 : f32 to vector<1x32xf32>
    %66 = arith.subf %65, %59 : vector<1x32xf32>
    %67 = arith.mulf %66, %64 : vector<1x32xf32>
    %68 = arith.mulf %59, %11 : vector<1x32xf32>
    %69 = arith.addf %67, %68 : vector<1x32xf32>
    %cst_27 = arith.constant dense<0.000000e+00> : vector<1x16xf32>
    %70 = tpu.matmul %69, %4, %cst_27 {dimension_numbers = #tpu.dot_dimension_numbers<[1], [0], [0], [1], [0, 0, 1, 1], [], []>} : vector<1x32xf32>, vector<32x16xf32>, vector<1x16xf32> -> vector<1x16xf32>
    %71 = arith.addf %70, %10 : vector<1x16xf32>
    %cst_28 = arith.constant dense<0xFF800000> : vector<1xf32>
    %72 = vector.multi_reduction <maximumf>, %71, %cst_28 [1] : vector<1x16xf32> to vector<1xf32>
    %73 = vector.shape_cast %72 : vector<1xf32> to vector<1x1xf32>
    %74 = vector.broadcast %73 : vector<1x1xf32> to vector<1x16xf32>
    %75 = arith.subf %71, %74 : vector<1x16xf32>
    %76 = math.exp %75 : vector<1x16xf32>
    %cst_29 = arith.constant dense<0.000000e+00> : vector<1xf32>
    %77 = vector.multi_reduction <add>, %76, %cst_29 [1] : vector<1x16xf32> to vector<1xf32>
    %78 = vector.shape_cast %77 : vector<1xf32> to vector<1x1xf32>
    %79 = math.log %78 : vector<1x1xf32>
    %80 = arith.addf %79, %73 : vector<1x1xf32>
    %81 = vector.broadcast %80 : vector<1x1xf32> to vector<1x16xf32>
    %82 = arith.subf %71, %81 : vector<1x16xf32>
    %83 = arith.index_cast %c0_i32 : i32 to index
    %c0_30 = arith.constant 0 : index
    %84 = vector.load %arg11[%83, %c0_30] : memref<1x16xf32, #tpu.memory_space<vmem>>, vector<1x16xf32>
    tpu.vector_store %arg11[%83, %c0_30], %82 {strides = array<i32>} : memref<1x16xf32, #tpu.memory_space<vmem>>, vector<1x16xf32>,
    %c1_i32 = arith.constant 1 : i32
    %c0_31 = arith.constant 0 : index
    %c0_32 = arith.constant 0 : index
    %85 = vector.load %arg12[%c0_31, %c0_32] : memref<1x32xf32, #tpu.memory_space<vmem>>, vector<1x32xf32>
    tpu.vector_store %arg12[%c0_31, %c0_32], %69 {strides = array<i32>} : memref<1x32xf32, #tpu.memory_space<vmem>>, vector<1x32xf32>,
    return
  }
  func.func @transform_0(%arg0: i32, %arg1: memref<1xi32, #tpu.memory_space<smem>>) -> (i32, i32) {
    %c0_i32 = arith.constant 0 : i32
    %c0_i32_0 = arith.constant 0 : i32
    %c0_i32_1 = arith.constant 0 : i32
    return %c0_i32, %c0_i32_0 : i32, i32
  }
  func.func @transform_1(%arg0: i32, %arg1: memref<1xi32, #tpu.memory_space<smem>>) -> (i32, i32) {
    %c0_i32 = arith.constant 0 : i32
    %c0_i32_0 = arith.constant 0 : i32
    %c0_i32_1 = arith.constant 0 : i32
    return %c0_i32, %c0_i32_0 : i32, i32
  }
  func.func @transform_2(%arg0: i32, %arg1: memref<1xi32, #tpu.memory_space<smem>>) -> (i32, i32) {
    %c0_i32 = arith.constant 0 : i32
    %c0_i32_0 = arith.constant 0 : i32
    %c0_i32_1 = arith.constant 0 : i32
    return %c0_i32, %c0_i32_0 : i32, i32
  }
  func.func @transform_3(%arg0: i32, %arg1: memref<1xi32, #tpu.memory_space<smem>>) -> (i32, i32) {
    %c0_i32 = arith.constant 0 : i32
    %c0_i32_0 = arith.constant 0 : i32
    %c0_i32_1 = arith.constant 0 : i32
    return %c0_i32, %c0_i32_0 : i32, i32
  }
  func.func @transform_4(%arg0: i32, %arg1: memref<1xi32, #tpu.memory_space<smem>>) -> (i32, i32) {
    %c0_i32 = arith.constant 0 : i32
    %c0_i32_0 = arith.constant 0 : i32
    %c0_i32_1 = arith.constant 0 : i32
    return %c0_i32, %c0_i32_0 : i32, i32
  }
  func.func @transform_5(%arg0: i32, %arg1: memref<1xi32, #tpu.memory_space<smem>>) -> (i32, i32) {
    %c0_i32 = arith.constant 0 : i32
    %c0_i32_0 = arith.constant 0 : i32
    %c0_i32_1 = arith.constant 0 : i32
    return %c0_i32, %c0_i32_0 : i32, i32
  }
  func.func @transform_6(%arg0: i32, %arg1: memref<1xi32, #tpu.memory_space<smem>>) -> (i32, i32) {
    %c0_i32 = arith.constant 0 : i32
    %c0_i32_0 = arith.constant 0 : i32
    %c0_i32_1 = arith.constant 0 : i32
    return %c0_i32, %c0_i32_0 : i32, i32
  }
  func.func @transform_7(%arg0: i32, %arg1: memref<1xi32, #tpu.memory_space<smem>>) -> (i32, i32) {
    %c0_i32 = arith.constant 0 : i32
    %c0_i32_0 = arith.constant 0 : i32
    %c0_i32_1 = arith.constant 0 : i32
    return %c0_i32, %c0_i32_0 : i32, i32
  }
  func.func @transform_8(%arg0: i32, %arg1: memref<1xi32, #tpu.memory_space<smem>>) -> (i32, i32) {
    %c0_i32 = arith.constant 0 : i32
    %c0_i32_0 = arith.constant 0 : i32
    %c0_i32_1 = arith.constant 0 : i32
    return %c0_i32, %c0_i32_0 : i32, i32
  }
  func.func @transform_9(%arg0: i32, %arg1: memref<1xi32, #tpu.memory_space<smem>>) -> (i32, i32) {
    %c0_i32 = arith.constant 0 : i32
    %c0_i32_0 = arith.constant 0 : i32
    %c0_i32_1 = arith.constant 0 : i32
    return %c0_i32, %c0_i32_0 : i32, i32
  }
  func.func @transform_10(%arg0: i32, %arg1: memref<1xi32, #tpu.memory_space<smem>>) -> (i32, i32) {
    %c0_i32 = arith.constant 0 : i32
    %c0_i32_0 = arith.constant 0 : i32
    %c0_i32_1 = arith.constant 0 : i32
    return %c0_i32, %c0_i32_0 : i32, i32
  }
  func.func @transform_11(%arg0: i32, %arg1: memref<1xi32, #tpu.memory_space<smem>>) -> (i32, i32) {
    %c0_i32 = arith.constant 0 : i32
    %c0_i32_0 = arith.constant 0 : i32
    %c0_i32_1 = arith.constant 0 : i32
    return %c0_i32, %c0_i32_0 : i32, i32
  }
}

</mosaic_0001>

<llo_original>
// kernel: tpu_custom_call.1
$region0: #{tpu_custom_call.1}
  #allocation0 [shape = 'u32[]', space=smem, size = 0x4, offset = 0x4, fixed_abs, tag = 'smem constant byte address 0x4 - core index']
  #allocation1 [shape = 'u32[72,128]{1,0:T(1,128)}', space=vmem, size = 0x9000, scoped, tag = 'internal scratch']
  #allocation2 [shape = 's32[1]{0}', space=sflag, size = 0x4, scoped, tag = 'scoped memory for tpu_custom_call.1']
  #allocation3 [shape = 's32[1]{0:T(128)S(6)}', space=smem, size = 0x200, scoped, tag = 'prefetched SMEM operand 0']
  %s0 = inlined_call_operand.<no memory space> [shape: s32[1], index: 0, kind: input, shape index: {}]
  %s1 = inlined_call_operand.vmem [shape: f32[16,32], index: 1, kind: input, shape index: {}]
  %s2 = inlined_call_operand.vmem [shape: f32[1,32], index: 2, kind: input, shape index: {}]
  %s3 = inlined_call_operand.vmem [shape: f32[34,32], index: 3, kind: input, shape index: {}]
  %s4 = inlined_call_operand.hbm [shape: f32[32,66], index: 4, kind: input, shape index: {}]
  %s5 = inlined_call_operand.vmem [shape: f32[32,130], index: 5, kind: input, shape index: {}]
  %s6 = inlined_call_operand.hbm [shape: f32[32,32], index: 6, kind: input, shape index: {}]
  %s7 = inlined_call_operand.hbm [shape: f32[32,96], index: 7, kind: input, shape index: {}]
  %s8 = inlined_call_operand.vmem [shape: f32[32,16], index: 8, kind: input, shape index: {}]
  %s9 = inlined_call_operand.vmem [shape: f32[4,130], index: 9, kind: input, shape index: {}]
  %s10 = inlined_call_operand.hbm [shape: f32[1,16], index: 10, kind: output, shape index: {0}]
  %s11 = inlined_call_operand.hbm [shape: f32[1,32], index: 11, kind: output, shape index: {1}]
  %s12 = inlined_call_operand.hbm [shape: f32[1,34], index: 12, kind: output, shape index: {2}]
  %13 = xla_tuple %s10, %s11, %s12
  %s14 = sld [smem:[#allocation0]]
  $region74: #{tpu_custom_call.1} parent=0
    _
  %s16 = ssub.s32 1, %s14
  %s17 = scalar_select 0, %s16, %s14
  %18 = sst [smem:[#allocation3]] %s0
  $region1: #{tpu_custom_call.1} parent=0
    #allocation4 [shape = 'u8[16384]{0}', space=vmem, size = 0x4000, scoped, tag = 'input window, operand 4, single buffered']
    #allocation5 [shape = 's32[1]{0}', space=sflag, size = 0x4, scoped, tag = 'scoped memory for tpu_custom_call.1']
    #allocation6 [shape = 's32[1]{0}', space=sflag, size = 0x4, scoped, tag = 'scoped memory for tpu_custom_call.1']
    #allocation7 [shape = 'u8[16384]{0}', space=vmem, size = 0x4000, scoped, tag = 'input window, operand 6, single buffered']
    #allocation8 [shape = 's32[1]{0}', space=sflag, size = 0x4, scoped, tag = 'scoped memory for tpu_custom_call.1']
    #allocation9 [shape = 'u8[16384]{0}', space=vmem, size = 0x4000, scoped, tag = 'input window, operand 7, single buffered']
    #allocation10 [shape = 'u8[512]{0}', space=vmem, size = 0x400, scoped, tag = 'output window, operand 0, single buffered']
    #allocation11 [shape = 'u8[512]{0}', space=vmem, size = 0x400, scoped, tag = 'output window, operand 1, single buffered']
    #allocation12 [shape = 's32[1]{0}', space=sflag, size = 0x4, scoped, tag = 'scoped memory for tpu_custom_call.1']
    #allocation13 [shape = 'u8[512]{0}', space=vmem, size = 0x400, scoped, tag = 'output window, operand 2, single buffered']
    %19 = vsyncpa [#allocation5], 0
    %20 = vsyncpa [#allocation8], 0
    %21 = vsyncpa [#allocation6], 0
    %22 = vsyncpa [#allocation12], 0
    // Predicated region
    $region2: #{tpu_custom_call.1} parent=1 // pred_check
      _
    $region3: #{tpu_custom_call.1} parent=1 // pred_check_branch
      %24 = sbr.rel (0) target = $region5
    $region4: #{tpu_custom_call.1} parent=1 // pred_region
      _
    $region5: #{tpu_custom_call.1} parent=1 // pred_fallthru
      _
    // Predicated region
    $region6: #{tpu_custom_call.1} parent=1 // pred_check
      _
    $region7: #{tpu_custom_call.1} parent=1 // pred_check_branch
      %26 = sbr.rel (0) target = $region9
    $region8: #{tpu_custom_call.1} parent=1 // pred_region
      _
    $region9: #{tpu_custom_call.1} parent=1 // pred_fallthru
      _
    // Predicated region
    $region10: #{tpu_custom_call.1} parent=1 // pred_check
      _
    $region11: #{tpu_custom_call.1} parent=1 // pred_check_branch
      %28 = sbr.rel (0) target = $region13
    $region12: #{tpu_custom_call.1} parent=1 // pred_region
      _
    $region13: #{tpu_custom_call.1} parent=1 // pred_fallthru
      _
    // Predicated region
    $region14: #{tpu_custom_call.1} parent=1 // pred_check
      _
    $region15: #{tpu_custom_call.1} parent=1 // pred_check_branch
      %30 = sbr.rel (0) target = $region17
    $region16: #{tpu_custom_call.1} parent=1 // pred_region
      %32 = vsyncadd [#allocation5], 0
      %s33 = sshll.u32 %s4, 4
      %s34 = int_to_ptr.hbm [resolvable:$true] %s33
      %s35 = sshll.u32 [#allocation4], 4
      %s36 = int_to_ptr.vmem [resolvable:$true] %s35
      %41 = dma.hbm_to_vmem [thread:$0]  %s34, 512, %s36, [#allocation5], 128, 128, 8
    $region17: #{tpu_custom_call.1} parent=1 // pred_fallthru
      _
    // Predicated region
    $region18: #{tpu_custom_call.1} parent=1 // pred_check
      _
    $region19: #{tpu_custom_call.1} parent=1 // pred_check_branch
      %43 = sbr.rel (0) target = $region21
    $region20: #{tpu_custom_call.1} parent=1 // pred_region
      _
    $region21: #{tpu_custom_call.1} parent=1 // pred_fallthru
      _
    // Predicated region
    $region22: #{tpu_custom_call.1} parent=1 // pred_check
      _
    $region23: #{tpu_custom_call.1} parent=1 // pred_check_branch
      %45 = sbr.rel (0) target = $region25
    $region24: #{tpu_custom_call.1} parent=1 // pred_region
      %47 = vsyncadd [#allocation8], 0
      %s48 = sshll.u32 %s6, 4
      %s49 = int_to_ptr.hbm [resolvable:$true] %s48
      %s50 = sshll.u32 [#allocation7], 4
      %s51 = int_to_ptr.vmem [resolvable:$true] %s50
      %56 = dma.hbm_to_vmem [thread:$0]  %s49, 512, %s51, [#allocation8], 128, 128, 8
    $region25: #{tpu_custom_call.1} parent=1 // pred_fallthru
      _
    // Predicated region
    $region26: #{tpu_custom_call.1} parent=1 // pred_check
      _
    $region27: #{tpu_custom_call.1} parent=1 // pred_check_branch
      %58 = sbr.rel (0) target = $region29
    $region28: #{tpu_custom_call.1} parent=1 // pred_region
      %60 = vsyncadd [#allocation8], 0
      %s61 = sshll.u32 %s7, 4
      %s62 = int_to_ptr.hbm [resolvable:$true] %s61
      %s63 = sshll.u32 [#allocation9], 4
      %s64 = int_to_ptr.vmem [resolvable:$true] %s63
      %69 = dma.hbm_to_vmem [thread:$0]  %s62, 512, %s64, [#allocation8], 128, 128, 8
    $region29: #{tpu_custom_call.1} parent=1 // pred_fallthru
      _
    // Predicated region
    $region30: #{tpu_custom_call.1} parent=1 // pred_check
      _
    $region31: #{tpu_custom_call.1} parent=1 // pred_check_branch
      %71 = sbr.rel (0) target = $region33
    $region32: #{tpu_custom_call.1} parent=1 // pred_region
      _
    $region33: #{tpu_custom_call.1} parent=1 // pred_fallthru
      _
    // Predicated region
    $region34: #{tpu_custom_call.1} parent=1 // pred_check
      _
    $region35: #{tpu_custom_call.1} parent=1 // pred_check_branch
      %73 = sbr.rel (0) target = $region37
    $region36: #{tpu_custom_call.1} parent=1 // pred_region
      _
    $region37: #{tpu_custom_call.1} parent=1 // pred_fallthru
      _
    // Predicated region
    $region38: #{tpu_custom_call.1} parent=1 // pred_check
      _
    $region39: #{tpu_custom_call.1} parent=1 // pred_check_branch
      %75 = sbr.rel (0) target = $region41
    $region40: #{tpu_custom_call.1} parent=1 // pred_region
      %77 = dma.done [#allocation5], 512
    $region41: #{tpu_custom_call.1} parent=1 // pred_fallthru
      _
    // Predicated region
    $region42: #{tpu_custom_call.1} parent=1 // pred_check
      _
    $region43: #{tpu_custom_call.1} parent=1 // pred_check_branch
      %79 = sbr.rel (0) target = $region45
    $region44: #{tpu_custom_call.1} parent=1 // pred_region
      %81 = dma.done [#allocation8], 512
    $region45: #{tpu_custom_call.1} parent=1 // pred_fallthru
      _
    // Predicated region
    $region46: #{tpu_custom_call.1} parent=1 // pred_check
      _
    $region47: #{tpu_custom_call.1} parent=1 // pred_check_branch
      %83 = sbr.rel (0) target = $region49
    $region48: #{tpu_custom_call.1} parent=1 // pred_region
      %85 = dma.done [#allocation8], 512
    $region49: #{tpu_custom_call.1} parent=1 // pred_fallthru
      _
    %v86 = vld [vmem:[#allocation4] sm:$0xff]
    %v87 = vld [vmem:[#allocation4 + $0x8] sm:$0xff]
    %v88 = vld [vmem:[#allocation4 + $0x10] sm:$0xff]
    %v89 = vld [vmem:[#allocation4 + $0x18] sm:$0xff]
    %v90 = vld [vmem:[%s5] sm:$0xff]
    %v91 = vld [vmem:[%s5 + $0x8] sm:$0xff]
    %v92 = vld [vmem:[%s5 + $0x10] sm:$0xff]
    %v93 = vld [vmem:[%s5 + $0x18] sm:$0xff]
    %v94 = vld [vmem:[%s5 + $0x20] sm:$0xff]
    %v95 = vld [vmem:[%s5 + $0x28] sm:$0xff]
    %v96 = vld [vmem:[%s5 + $0x30] sm:$0xff]
    %v97 = vld [vmem:[%s5 + $0x38] sm:$0xff]
    %v98 = vld [vmem:[#allocation7] sm:$0xff]
    %v99 = vld [vmem:[#allocation7 + $0x8] sm:$0xff]
    %v100 = vld [vmem:[#allocation7 + $0x10] sm:$0xff]
    %v101 = vld [vmem:[#allocation7 + $0x18] sm:$0xff]
    %v102 = vld [vmem:[#allocation9] sm:$0xff]
    %v103 = vld [vmem:[#allocation9 + $0x8] sm:$0xff]
    %v104 = vld [vmem:[#allocation9 + $0x10] sm:$0xff]
    %v105 = vld [vmem:[#allocation9 + $0x18] sm:$0xff]
    %v106 = vld [vmem:[%s8] sm:$0xff]
    %v107 = vld [vmem:[%s8 + $0x8] sm:$0xff]
    %v108 = vld [vmem:[%s8 + $0x10] sm:$0xff]
    %v109 = vld [vmem:[%s8 + $0x18] sm:$0xff]
    %v110 = vld [vmem:[%s3] sm:$0xff]
    %v111 = vld [vmem:[%s3 + $0x8] sm:$0xff]
    %v112 = vld [vmem:[%s3 + $0x10] sm:$0xff]
    %v113 = vld [vmem:[%s3 + $0x18] sm:$0xff]
    %v114 = vld [vmem:[%s3 + $0x20] sm:$0x3]
    %v115 = vld [vmem:[%s9] sm:$0xff]
    %v116 = vld [vmem:[%s2] sm:$0x1]
    %s117 = sld [smem:[#allocation3]]
    %s118 = scalar_lea.vmem %s1, %s117
    %v119 = vld [vmem:[%s118] sm:$0x1]
    %vm120 = vcmask 261120
    %v122 = vsel %vm120, %v119, 0
    %124 = vmatpush.msra.mxu0 0.0
    %125 = vmatpush.msra.mxu0 0.0
    %126 = vmatpush.msra.mxu0 0.0
    %127 = vmatpush.msra.mxu0 0.0
    %128 = vmatpush.msra.mxu0 0.0
    %129 = vmatpush.msra.mxu0 0.0
    %130 = vmatpush.msra.mxu0 0.0
    %131 = vmatpush.msra.mxu0 0.0
    %132 = vmatpush.msra.mxu0 0.0
    %133 = vmatpush.msra.mxu0 0.0
    %134 = vmatpush.msra.mxu0 0.0
    %135 = vmatpush.msra.mxu0 0.0
    %136 = vmatpush.msra.mxu0 %v89
    %137 = vmatpush.msra.mxu0 %v88
    %138 = vmatpush.msra.mxu0 %v87
    %139 = vmatpush.msra.mxu0 %v86
    %140 = vmatmul.f32.gmra.mxu0 %v122
    %v141 = vpop.f32.mrf.mxu0
    %v142 = vadd.f32 %v115, %v141
    %143 = vdwg.mxu0
    %v145 = vperm.slane %v115, 1
    %v146 = vperm.slane %v115, 5
    %v150 = vsel %vm120, %v116, 0
    %152 = vmatpush.msra.mxu0 0.0
    %153 = vmatpush.msra.mxu0 0.0
    %154 = vmatpush.msra.mxu0 0.0
    %155 = vmatpush.msra.mxu0 0.0
    %156 = vmatpush.msra.mxu0 0.0
    %157 = vmatpush.msra.mxu0 0.0
    %158 = vmatpush.msra.mxu0 0.0
    %159 = vmatpush.msra.mxu0 0.0
    %160 = vmatpush.msra.mxu0 0.0
    %161 = vmatpush.msra.mxu0 0.0
    %162 = vmatpush.msra.mxu0 0.0
    %163 = vmatpush.msra.mxu0 0.0
    %164 = vmatpush.msra.mxu0 %v96
    %165 = vmatpush.msra.mxu0 %v94
    %166 = vmatpush.msra.mxu0 %v92
    %167 = vmatpush.msra.mxu0 %v90
    %168 = vmatmul.f32.gmra.mxu0 %v150
    %v169 = vpop.f32.mrf.mxu0
    %v170 = vadd.f32 %v145, %v169
    %171 = vdwg.mxu0
    %172 = vmatpush.msra.mxu0 0.0
    %173 = vmatpush.msra.mxu0 0.0
    %174 = vmatpush.msra.mxu0 0.0
    %175 = vmatpush.msra.mxu0 0.0
    %176 = vmatpush.msra.mxu0 0.0
    %177 = vmatpush.msra.mxu0 0.0
    %178 = vmatpush.msra.mxu0 0.0
    %179 = vmatpush.msra.mxu0 0.0
    %180 = vmatpush.msra.mxu0 0.0
    %181 = vmatpush.msra.mxu0 0.0
    %182 = vmatpush.msra.mxu0 0.0
    %183 = vmatpush.msra.mxu0 0.0
    %184 = vmatpush.msra.mxu0 %v97
    %185 = vmatpush.msra.mxu0 %v95
    %186 = vmatpush.msra.mxu0 %v93
    %187 = vmatpush.msra.mxu0 %v91
    %188 = vmatmul.f32.gmra.mxu0 %v150
    %v189 = vpop.f32.mrf.mxu0
    %v190 = vadd.f32 %v146, %v189
    %191 = vdwg.mxu0
    %v192 = vadd.f32 %v142, %v170
    %vm193 = vcmask 270336
    %v194 = vsel %vm193, %v192, -inf
    %195 = vmax.xlane.f32.xlu0 %v194
    %v196 = vpop.xlane.xlu0 %195
    %v197 = vsub.f32 %v192, %v196
    %v198 = vmul.f32 %v197, 1.442695
    %v199 = vpow.pop %v198
    %v200 = vsel %vm193, %v199, 0.0
    %201 = vadd.xlane.f32.xlu0 %v200
    %v202 = vpop.xlane.xlu0 %201
    %v203 = vrcp.pop %v202
    %v204 = vmul.f32 %v199, %v203
    %205 = vst.msk [vmem:[#allocation13] sm:$0x1] %vm193, %v204
    %vm206 = vcmask 277504
    %v208 = vsel %vm206, %v204, 0
    %vm210 = vcmask 1041408
    %v212 = vsel %vm210, %v114, 0
    %214 = vmatpush.msra.mxu0 0.0
    %215 = vmatpush.msra.mxu0 0.0
    %216 = vmatpush.msra.mxu0 0.0
    %217 = vmatpush.msra.mxu0 0.0
    %218 = vmatpush.msra.mxu0 0.0
    %219 = vmatpush.msra.mxu0 0.0
    %220 = vmatpush.msra.mxu0 0.0
    %221 = vmatpush.msra.mxu0 0.0
    %222 = vmatpush.msra.mxu0 0.0
    %223 = vmatpush.msra.mxu0 0.0
    %224 = vmatpush.msra.mxu0 0.0
    %225 = vmatpush.msra.mxu0 %v212
    %226 = vmatpush.msra.mxu0 %v113
    %227 = vmatpush.msra.mxu0 %v112
    %228 = vmatpush.msra.mxu0 %v111
    %229 = vmatpush.msra.mxu0 %v110
    %230 = vmatmul.f32.gmra.mxu0 %v208
    %v231 = vpop.f32.mrf.mxu0
    %v232 = vadd.f32 0.0, %v231
    %233 = vdwg.mxu0
    %v235 = vsel %vm120, %v232, 0
    %237 = vmatpush.msra.mxu0 0.0
    %238 = vmatpush.msra.mxu0 0.0
    %239 = vmatpush.msra.mxu0 0.0
    %240 = vmatpush.msra.mxu0 0.0
    %241 = vmatpush.msra.mxu0 0.0
    %242 = vmatpush.msra.mxu0 0.0
    %243 = vmatpush.msra.mxu0 0.0
    %244 = vmatpush.msra.mxu0 0.0
    %245 = vmatpush.msra.mxu0 0.0
    %246 = vmatpush.msra.mxu0 0.0
    %247 = vmatpush.msra.mxu0 0.0
    %248 = vmatpush.msra.mxu0 0.0
    %249 = vmatpush.msra.mxu0 %v101
    %250 = vmatpush.msra.mxu0 %v100
    %251 = vmatpush.msra.mxu0 %v99
    %252 = vmatpush.msra.mxu0 %v98
    %253 = vmatmul.f32.gmra.mxu0 %v235
    %v254 = vpop.f32.mrf.mxu0
    %v255 = vadd.f32 0.0, %v254
    %256 = vdwg.mxu0
    %258 = vrot.lane.b32.xlu0 %v255, 34
    %v259 = vpop.permute.xlu0 %258
    %v261 = vadd.f32 %v142, %v259
    %v262 = vmax.f32 %v261, 0.0
    %264 = vrot.lane.b32.xlu0 %v262, 94
    %v265 = vpop.permute.xlu0 %264
    %v266 = vperm.slane %v115, 2
    %v268 = vsel %vm120, %v265, 0
    %270 = vmatpush.msra.mxu0 0.0
    %271 = vmatpush.msra.mxu0 0.0
    %272 = vmatpush.msra.mxu0 0.0
    %273 = vmatpush.msra.mxu0 0.0
    %274 = vmatpush.msra.mxu0 0.0
    %275 = vmatpush.msra.mxu0 0.0
    %276 = vmatpush.msra.mxu0 0.0
    %277 = vmatpush.msra.mxu0 0.0
    %278 = vmatpush.msra.mxu0 0.0
    %279 = vmatpush.msra.mxu0 0.0
    %280 = vmatpush.msra.mxu0 0.0
    %281 = vmatpush.msra.mxu0 0.0
    %282 = vmatpush.msra.mxu0 %v105
    %283 = vmatpush.msra.mxu0 %v104
    %284 = vmatpush.msra.mxu0 %v103
    %285 = vmatpush.msra.mxu0 %v102
    %286 = vmatmul.f32.gmra.mxu0 %v268
    %v287 = vpop.f32.mrf.mxu0
    %v288 = vadd.f32 %v266, %v287
    %289 = vdwg.mxu0
    %291 = vrot.lane.b32.xlu0 %v170, 94
    %v292 = vpop.permute.xlu0 %291
    %v294 = vadd.f32 %v288, %v292
    %v295 = vxor.u32 %v294, 2147483648
    %v296 = vmul.f32 %v295, 1.442695
    %v297 = vpow.pop %v296
    %v298 = vadd.f32 %v297, 1.0
    %v299 = vrcp.pop %v298
    %v300 = vmul.f32 %v298, %v299
    %v301 = vsub.f32 1.0, %v300
    %v302 = vmul.f32 %v299, %v301
    %v303 = vadd.f32 %v299, %v302
    %vm304 = vweird.f32 %v298
    %vm305 = vweird.f32 %v299
    %vm306 = vmor %vm304, %vm305
    %v307 = vsel %vm306, %v299, %v303
    %v308 = vand.u32 2147483647, %v298
    %vm309 = vcmp.eq.f32.partialorder %v308, 8.507059e+37
    %v310 = vand.u32 %v298, 2147483648
    %v311 = vor.u32 1.1754944e-38, %v310
    %v312 = vsel %vm309, %v311, %v307
    %v313 = vmul.f32 1.0, %v312
    %315 = vrot.lane.b32.xlu0 %v170, 30
    %v316 = vpop.permute.xlu0 %315
    %317 = vrot.lane.b32.xlu0 %v190, 30
    %v318 = vpop.permute.xlu0 %317
    %vm319 = vcmask 244736
    %v320 = vsel %vm319, %v316, %v318
    %v322 = vmul.f32 %v313, %v320
    %324 = vrot.lane.b32.xlu0 %v322, 64
    %v325 = vpop.permute.xlu0 %324
    %v327 = vadd.f32 %v288, %v325
    %v328 = vtanh.pop %v327
    %v329 = vsub.f32 1.0, %v313
    %331 = vrot.lane.b32.xlu0 %v328, 96
    %v332 = vpop.permute.xlu0 %331
    %v334 = vmul.f32 %v329, %v332
    %v335 = vperm.slane %v116, 0
    %336 = vrot.lane.b32.xlu0 %v335, 32
    %v337 = vpop.permute.xlu0 %336
    %v339 = vmul.f32 %v313, %v337
    %v340 = vadd.f32 %v334, %v339
    %342 = vrot.lane.b32.xlu0 %v340, 96
    %v343 = vpop.permute.xlu0 %342
    %v344 = vperm.slane %v115, 3
    %v346 = vsel %vm120, %v343, 0
    %348 = vmatpush.msra.mxu0 0.0
    %349 = vmatpush.msra.mxu0 0.0
    %350 = vmatpush.msra.mxu0 0.0
    %351 = vmatpush.msra.mxu0 0.0
    %352 = vmatpush.msra.mxu0 0.0
    %353 = vmatpush.msra.mxu0 0.0
    %354 = vmatpush.msra.mxu0 0.0
    %355 = vmatpush.msra.mxu0 0.0
    %356 = vmatpush.msra.mxu0 0.0
    %357 = vmatpush.msra.mxu0 0.0
    %358 = vmatpush.msra.mxu0 0.0
    %359 = vmatpush.msra.mxu0 0.0
    %360 = vmatpush.msra.mxu0 %v109
    %361 = vmatpush.msra.mxu0 %v108
    %362 = vmatpush.msra.mxu0 %v107
    %363 = vmatpush.msra.mxu0 %v106
    %364 = vmatmul.f32.gmra.mxu0 %v346
    %v365 = vpop.f32.mrf.mxu0
    %v366 = vadd.f32 %v344, %v365
    %367 = vdwg.mxu0
    %vm368 = vcmask 122880
    %v369 = vsel %vm368, %v366, -inf
    %370 = vmax.xlane.f32.xlu0 %v369
    %v371 = vpop.xlane.xlu0 %370
    %v372 = vsub.f32 %v366, %v371
    %v373 = vmul.f32 %v372, 1.442695
    %v374 = vpow.pop %v373
    %v375 = vsel %vm368, %v374, 0.0
    %376 = vadd.xlane.f32.xlu0 %v375
    %v377 = vpop.xlane.xlu0 %376
    %v378 = vlog2.pop %v377
    %v379 = vmul.f32 %v378, 0.6931472
    %v380 = vadd.f32 %v379, %v371
    %v381 = vsub.f32 %v366, %v380
    %382 = vst.msk [vmem:[#allocation10] sm:$0x1] %vm368, %v381
    %vm384 = vcmask 253952
    %385 = vst.msk [vmem:[#allocation11] sm:$0x1] %vm384, %v343
    // Predicated region
    $region50: #{tpu_custom_call.1} parent=1 // pred_check
      _
    $region51: #{tpu_custom_call.1} parent=1 // pred_check_branch
      %387 = sbr.rel (0) target = $region53
    $region52: #{tpu_custom_call.1} parent=1 // pred_region
      %389 = vsyncadd [#allocation6], 0
      %s391 = sshll.u32 [#allocation10], 4
      %s392 = int_to_ptr.vmem [resolvable:$true] %s391
      %s393 = sshll.u32 %s10, 4
      %s394 = int_to_ptr.hbm [resolvable:$true] %s393
      %396 = dma.vmem_to_hbm [thread:$0]  %s392, 16, %s394, [#allocation6]
    $region53: #{tpu_custom_call.1} parent=1 // pred_fallthru
      _
    // Predicated region
    $region54: #{tpu_custom_call.1} parent=1 // pred_check
      _
    $region55: #{tpu_custom_call.1} parent=1 // pred_check_branch
      %398 = sbr.rel (0) target = $region57
    $region56: #{tpu_custom_call.1} parent=1 // pred_region
      %400 = vsyncadd [#allocation12], 0
      %s402 = sshll.u32 [#allocation11], 4
      %s403 = int_to_ptr.vmem [resolvable:$true] %s402
      %s404 = sshll.u32 %s11, 4
      %s405 = int_to_ptr.hbm [resolvable:$true] %s404
      %407 = dma.vmem_to_hbm [thread:$0]  %s403, 16, %s405, [#allocation12]
    $region57: #{tpu_custom_call.1} parent=1 // pred_fallthru
      _
    // Predicated region
    $region58: #{tpu_custom_call.1} parent=1 // pred_check
      _
    $region59: #{tpu_custom_call.1} parent=1 // pred_check_branch
      %409 = sbr.rel (0) target = $region61
    $region60: #{tpu_custom_call.1} parent=1 // pred_region
      %411 = vsyncadd [#allocation12], 0
      %s413 = sshll.u32 [#allocation13], 4
      %s414 = int_to_ptr.vmem [resolvable:$true] %s413
      %s415 = sshll.u32 %s12, 4
      %s416 = int_to_ptr.hbm [resolvable:$true] %s415
      %418 = dma.vmem_to_hbm [thread:$0]  %s414, 16, %s416, [#allocation12]
    $region61: #{tpu_custom_call.1} parent=1 // pred_fallthru
      _
    // Predicated region
    $region62: #{tpu_custom_call.1} parent=1 // pred_check
      _
    $region63: #{tpu_custom_call.1} parent=1 // pred_check_branch
      %420 = sbr.rel (0) target = $region65
    $region64: #{tpu_custom_call.1} parent=1 // pred_region
      %422 = dma.done [#allocation6], 16
    $region65: #{tpu_custom_call.1} parent=1 // pred_fallthru
      _
    // Predicated region
    $region66: #{tpu_custom_call.1} parent=1 // pred_check
      _
    $region67: #{tpu_custom_call.1} parent=1 // pred_check_branch
      %424 = sbr.rel (0) target = $region69
    $region68: #{tpu_custom_call.1} parent=1 // pred_region
      %426 = dma.done [#allocation12], 16
    $region69: #{tpu_custom_call.1} parent=1 // pred_fallthru
      _
    // Predicated region
    $region70: #{tpu_custom_call.1} parent=1 // pred_check
      _
    $region71: #{tpu_custom_call.1} parent=1 // pred_check_branch
      %428 = sbr.rel (0) target = $region73
    $region72: #{tpu_custom_call.1} parent=1 // pred_region
      %430 = dma.done [#allocation12], 16
    $region73: #{tpu_custom_call.1} parent=1 // pred_fallthru
      _
    %431 = vsyncpa [#allocation5], 1
    %432 = vsyncpa [#allocation8], 1
    %433 = vsyncpa [#allocation6], 1
    %434 = vsyncpa [#allocation12], 1

</llo_original>
